<compile_context>
chip_gen: v6e
topology: v6e:2x2x1
jax: 0.10.0
libtpu: 0.0.40
codegen_flags: <defaults>
</compile_context>

<pallas_src>
import functools

import jax
import jax.numpy as jnp
from jax.experimental import pallas as pl
from jax.experimental.pallas import tpu as pltpu

LN_EPS = 1e-5  # torch.nn.LayerNorm default
_HAS_BUFFERED = hasattr(pl, "Buffered")


def _round_up(x, m):
    return (x + m - 1) // m * m


def _vmem_capacity_bytes():
    """Physical VMEM per TensorCore; conservative (v7x) fallback."""
    try:
        info = pltpu.get_tpu_info()
        cap = getattr(info, "vmem_capacity_bytes", None)
        if cap:
            return int(cap)
    except Exception:
        pass
    return 64 * 1024 * 1024


# ---------------------------------------------------------------------------
# Kernel
# ---------------------------------------------------------------------------
def _decoder_block_kernel(x_ref, w1_ref, vec_ref, w2_ref, o_ref, *, d_valid):
    # vec_ref rows: 0=b1, 1=gamma, 2=beta, 3=b2 (each zero-padded to d_pad).

    # --- Linear 1: [TM, d_model] @ [d_model, Dp] + b1 (bf16 MXU, f32 acc) ---
    x_bf = x_ref[...].astype(jnp.bfloat16)
    h = jnp.dot(x_bf, w1_ref[...], preferred_element_type=jnp.float32)
    h = h + vec_ref[0:1, :]

    # --- ReLU ---
    h = jnp.maximum(h, 0.0)

    # --- LayerNorm (biased variance, torch-style), one-pass statistics.
    # Padded lanes of h are exactly 0 (zero-padded W1 columns / b1, relu(0)=0)
    # so unmasked lane sums over Dp equal sums over the true D; divide by D.
    # The two reductions are independent -> both XLU units can overlap them.
    inv_d = 1.0 / d_valid
    mean = jnp.sum(h, axis=-1, keepdims=True) * inv_d
    mean_sq = jnp.sum(h * h, axis=-1, keepdims=True) * inv_d
    var = mean_sq - mean * mean
    # Fold gamma into the rsqrt factor.  gamma/beta are zero-padded, so
    # padded lanes of hn are exactly 0 and zero-padded W2 rows are inert.
    scale = vec_ref[1:2, :] * jax.lax.rsqrt(var + LN_EPS)
    hn = (h - mean) * scale + vec_ref[2:3, :]

    # --- Linear 2: [TM, Dp] @ [Dp, Dp] + b2 (bf16 MXU, f32 acc) ---
    o = jnp.dot(hn.astype(jnp.bfloat16), w2_ref[...],
                preferred_element_type=jnp.float32) + vec_ref[3:4, :]

    d_store = o_ref.shape[-1]          # == d_valid; no-op slice when unpadded
    o_ref[...] = o[:, :d_store].astype(o_ref.dtype)


# ---------------------------------------------------------------------------
# One-time parameter prep (hoisted out of the per-call path)
# ---------------------------------------------------------------------------
def prepare_params(params):
    """Pad the feature dim to a 128-lane multiple, cast weights to bf16 and
    pack the four per-feature vectors into one (4, d_pad) f32 slab."""
    w1, b1, gamma, beta, w2, b2 = params
    _, d_out = w1.shape
    d_pad = _round_up(d_out, 128)
    pad_c = d_pad - d_out
    if pad_c:
        w1 = jnp.pad(w1, ((0, 0), (0, pad_c)))
        w2 = jnp.pad(w2, ((0, pad_c), (0, pad_c)))
    w1p = w1.astype(jnp.bfloat16)
    w2p = w2.astype(jnp.bfloat16)
    vecs = jnp.stack([b1, gamma, beta, b2]).astype(jnp.float32)
    if pad_c:
        vecs = jnp.pad(vecs, ((0, 0), (0, pad_c)))   # gamma pad=0 -> hn pad=0
    return w1p, vecs, w2p, d_out


# ---------------------------------------------------------------------------
# Forward wrapper
# ---------------------------------------------------------------------------
@functools.partial(jax.jit,
                   static_argnames=("d_out", "block_m", "single_buffer_weights"))
def decoder_block_forward(x, w1p, vecs, w2p, *, d_out, block_m=None,
                          single_buffer_weights=True):
    """x: [batch, seq, d_model] float32 -> [batch, seq, d_out] float32."""
    batch, seq, d_model = x.shape
    d_pad = w1p.shape[1]
    M = batch * seq
    x2d = x.reshape(M, d_model)

    # ---- VMEM budget & row-tile size (all trace-time Python) ----
    cap = _vmem_capacity_bytes()
    vmem_limit = max(32 << 20, min(cap - (12 << 20), 100 << 20))
    if block_m is None:
        block_m = 1024 if cap >= (128 << 20) else 512
    block_m = max(8, _round_up(block_m, 8))

    wbuf = 1 if (single_buffer_weights and _HAS_BUFFERED) else 2
    fixed_bytes = wbuf * (w1p.size * 2 + w2p.size * 2) + 8 * d_pad * 4
    # double-buffered x / out tiles + ~6 f32/bf16 intermediates of width d_pad
    per_row = 2 * d_model * 4 + 2 * d_out * 4 + 6 * d_pad * 4
    budget = vmem_limit - fixed_bytes - (4 << 20)        # compiler headroom
    budget_tm = max(8, (budget // per_row) // 8 * 8)

    # >= 2 grid steps when M allows it, so "parallel" spans both v7x TCs.
    tm = min(block_m, budget_tm, max(8, _round_up(pl.cdiv(M, 2), 8)))
    grid = (pl.cdiv(M, tm),)          # tail block handled by masked store

    def const_spec(shape):
        idx = lambda i: (0,) * len(shape)
        if single_buffer_weights and _HAS_BUFFERED:
            try:
                return pl.BlockSpec(shape, idx, pipeline_mode=pl.Buffered(1))
            except TypeError:
                pass
        return pl.BlockSpec(shape, idx)

    kernel = functools.partial(_decoder_block_kernel, d_valid=d_out)

    out2d = pl.pallas_call(
        kernel,
        out_shape=jax.ShapeDtypeStruct((M, d_out), x.dtype),
        grid_spec=pltpu.PrefetchScalarGridSpec(
            num_scalar_prefetch=0,
            grid=grid,
            in_specs=[
                pl.BlockSpec((tm, d_model), lambda i: (i, 0)),   # x tile
                const_spec((d_model, d_pad)),                    # W1 (bf16)
                const_spec((4, d_pad)),                          # b1/gamma/beta/b2
                const_spec((d_pad, d_pad)),                      # W2 (bf16)
            ],
            out_specs=pl.BlockSpec((tm, d_out), lambda i: (i, 0)),
        ),
        compiler_params=pltpu.CompilerParams(
            dimension_semantics=("parallel",),
            vmem_limit_bytes=int(vmem_limit),
        ),
    )(x2d, w1p, vecs, w2p)

    return out2d.reshape(batch, seq, d_out)


# ---------------------------------------------------------------------------
# Params / references
# ---------------------------------------------------------------------------
def init_params(key, d_model, output_dim, dtype=jnp.float32):
    """Deterministic synthetic params; mimics torch Linear/LayerNorm init but
    stores Linear weights transposed as [in, out]."""
    k1, k2, k3, k4 = jax.random.split(key, 4)
    s1 = 1.0 / jnp.sqrt(d_model)
    s2 = 1.0 / jnp.sqrt(output_dim)
    w1 = jax.random.uniform(k1, (d_model, output_dim), dtype, -s1, s1)
    b1 = jax.random.uniform(k2, (output_dim,), dtype, -s1, s1)
    gamma = jnp.ones((output_dim,), dtype)
    beta = jnp.zeros((output_dim,), dtype)
    w2 = jax.random.uniform(k3, (output_dim, output_dim), dtype, -s2, s2)
    b2 = jax.random.uniform(k4, (output_dim,), dtype, -s2, s2)
    return (w1, b1, gamma, beta, w2, b2)


def _reference_matched(x, params):
    """Pure-JAX reference with the SAME numerics as the kernel (bf16 matmul
    inputs, f32 accumulation, f32 one-pass LayerNorm statistics)."""
    w1, b1, gamma, beta, w2, b2 = params
    h = jnp.dot(x.astype(jnp.bfloat16), w1.astype(jnp.bfloat16),
                preferred_element_type=jnp.float32) + b1
    h = jnp.maximum(h, 0.0)
    mean = jnp.mean(h, axis=-1, keepdims=True)
    var = jnp.mean(h * h, axis=-1, keepdims=True) - mean * mean
    hn = (h - mean) * (gamma * jax.lax.rsqrt(var + LN_EPS)) + beta
    return jnp.dot(hn.astype(jnp.bfloat16), w2.astype(jnp.bfloat16),
                   preferred_element_type=jnp.float32) + b2


def _reference_f32(x, params):
    """Full-f32 reference (torch semantics, minus the unsupported f64)."""
    w1, b1, gamma, beta, w2, b2 = params
    h = jnp.maximum(x @ w1 + b1, 0.0)
    mean = jnp.mean(h, axis=-1, keepdims=True)
    var = jnp.mean((h - mean) ** 2, axis=-1, keepdims=True)
    hn = (h - mean) * jax.lax.rsqrt(var + LN_EPS) * gamma + beta
    return hn @ w2 + b2


if __name__ == "__main__":
    batch, seq = 2, 8
    d_model, output_dim = 32, 32

    key = jax.random.PRNGKey(0)
    kx, kp = jax.random.split(key)
    x = jax.random.normal(kx, (batch, seq, d_model), jnp.float32)
    params = init_params(kp, d_model, output_dim)
    w1p, vecs, w2p, d_out = prepare_params(params)

    # Prefer single-buffered constant weights; fall back if this JAX build
    # rejects pipeline_mode=pl.Buffered(1).
    sb = _HAS_BUFFERED
    try:
        out = decoder_block_forward(x, w1p, vecs, w2p, d_out=d_out,
                                    single_buffer_weights=sb)
        jax.block_until_ready(out)
    except Exception:
        sb = False
        out = decoder_block_forward(x, w1p, vecs, w2p, d_out=d_out,
                                    single_buffer_weights=sb)
        jax.block_until_ready(out)

    assert out.shape == (batch, seq, output_dim)

    # Tight check against a precision-matched reference (validates tiling,
    # lane padding and the LayerNorm logic).
    ref_m = _reference_matched(x, params)
    assert jnp.allclose(out, ref_m, atol=2e-4, rtol=1e-4), (
        float(jnp.max(jnp.abs(out - ref_m))))

    # Loose check against the full-f32 reference (bf16 matmul inputs only
    # cost a few 1e-2 absolute at these scales).
    ref_f = _reference_f32(x, params)
    assert jnp.allclose(out, ref_f, atol=2e-1, rtol=5e-2), (
        float(jnp.max(jnp.abs(out - ref_f))))

    # Tail / tiny-M path: M = 3 (< 8, not a multiple of 8) exercises the
    # masked tail block with no host-side padding of x.
    x_tail = jax.random.normal(jax.random.PRNGKey(1), (1, 3, d_model),
                               jnp.float32)
    out_tail = decoder_block_forward(x_tail, w1p, vecs, w2p, d_out=d_out,
                                     single_buffer_weights=sb)
    jax.block_until_ready(out_tail)
    ref_tail = _reference_matched(x_tail, params)
    assert out_tail.shape == (1, 3, output_dim)
    assert jnp.allclose(out_tail, ref_tail, atol=2e-4, rtol=1e-4), (
        float(jnp.max(jnp.abs(out_tail - ref_tail))))

    print("KERNEL_OK")
</pallas_src>

<mosaic_0001>
module attributes {stable_mosaic.version = 11 : i64} {
  func.func @_decoder_block_kernel(%arg0: i32, %arg1: memref<8x32xf32, #tpu.memory_space<vmem>>, %arg2: memref<32x128xbf16, #tpu.memory_space<vmem>>, %arg3: memref<4x128xf32, #tpu.memory_space<vmem>>, %arg4: memref<128x128xbf16, #tpu.memory_space<vmem>>, %arg5: memref<8x32xf32, #tpu.memory_space<vmem>>) attributes {dimension_semantics = [#tpu.dimension_semantics<parallel>], iteration_bounds = array<i64: 2>, scalar_prefetch = 0 : i64, scratch_operands = 0 : i64, tpu.core_type = #tpu.core_type<tc>, window_params = [{transform_indices = @transform_0, window_bounds = array<i64: 8, 32>}, {pipeline_mode = #tpu.pipeline_mode<synchronous>, transform_indices = @transform_1, window_bounds = array<i64: 32, 128>}, {pipeline_mode = #tpu.pipeline_mode<synchronous>, transform_indices = @transform_2, window_bounds = array<i64: 4, 128>}, {pipeline_mode = #tpu.pipeline_mode<synchronous>, transform_indices = @transform_3, window_bounds = array<i64: 128, 128>}, {transform_indices = @transform_4, window_bounds = array<i64: 8, 32>}]} {
    %c0 = arith.constant 0 : index
    %c0_0 = arith.constant 0 : index
    %0 = vector.load %arg1[%c0, %c0_0] : memref<8x32xf32, #tpu.memory_space<vmem>>, vector<8x32xf32>
    %1 = arith.truncf %0 : vector<8x32xf32> to vector<8x32xbf16>
    %c0_1 = arith.constant 0 : index
    %c0_2 = arith.constant 0 : index
    %2 = vector.load %arg2[%c0_1, %c0_2] : memref<32x128xbf16, #tpu.memory_space<vmem>>, vector<32x128xbf16>
    %cst = arith.constant dense<0.000000e+00> : vector<8x128xf32>
    %3 = tpu.matmul %1, %2, %cst {dimension_numbers = #tpu.dot_dimension_numbers<[1], [0], [0], [1], [0, 0, 1, 1], [], []>} : vector<8x32xbf16>, vector<32x128xbf16>, vector<8x128xf32> -> vector<8x128xf32>
    %c0_3 = arith.constant 0 : index
    %c0_4 = arith.constant 0 : index
    %4 = vector.load %arg3[%c0_3, %c0_4] : memref<4x128xf32, #tpu.memory_space<vmem>>, vector<1x128xf32>
    %5 = vector.broadcast %4 : vector<1x128xf32> to vector<8x128xf32>
    %6 = arith.addf %3, %5 : vector<8x128xf32>
    %cst_5 = arith.constant 0.000000e+00 : f32
    %7 = vector.broadcast %cst_5 : f32 to vector<8x128xf32>
    %8 = arith.maximumf %6, %7 : vector<8x128xf32>
    %cst_6 = arith.constant dense<0.000000e+00> : vector<8xf32>
    %9 = vector.multi_reduction <add>, %8, %cst_6 [1] : vector<8x128xf32> to vector<8xf32>
    %10 = vector.shape_cast %9 : vector<8xf32> to vector<8x1xf32>
    %cst_7 = arith.constant 3.125000e-02 : f32
    %11 = vector.broadcast %cst_7 : f32 to vector<8x1xf32>
    %12 = arith.mulf %10, %11 : vector<8x1xf32>
    %13 = arith.mulf %8, %8 : vector<8x128xf32>
    %cst_8 = arith.constant dense<0.000000e+00> : vector<8xf32>
    %14 = vector.multi_reduction <add>, %13, %cst_8 [1] : vector<8x128xf32> to vector<8xf32>
    %15 = vector.shape_cast %14 : vector<8xf32> to vector<8x1xf32>
    %cst_9 = arith.constant 3.125000e-02 : f32
    %16 = vector.broadcast %cst_9 : f32 to vector<8x1xf32>
    %17 = arith.mulf %15, %16 : vector<8x1xf32>
    %18 = arith.mulf %12, %12 : vector<8x1xf32>
    %19 = arith.subf %17, %18 : vector<8x1xf32>
    %c1 = arith.constant 1 : index
    %c0_10 = arith.constant 0 : index
    %20 = vector.load %arg3[%c1, %c0_10] : memref<4x128xf32, #tpu.memory_space<vmem>>, vector<1x128xf32>
    %cst_11 = arith.constant 9.99999974E-6 : f32
    %21 = vector.broadcast %cst_11 : f32 to vector<8x1xf32>
    %22 = arith.addf %19, %21 : vector<8x1xf32>
    %23 = math.rsqrt %22 : vector<8x1xf32>
    %24 = vector.broadcast %20 : vector<1x128xf32> to vector<8x128xf32>
    %25 = vector.broadcast %23 : vector<8x1xf32> to vector<8x128xf32>
    %26 = arith.mulf %24, %25 : vector<8x128xf32>
    %27 = vector.broadcast %12 : vector<8x1xf32> to vector<8x128xf32>
    %28 = arith.subf %8, %27 : vector<8x128xf32>
    %29 = arith.mulf %28, %26 : vector<8x128xf32>
    %c2 = arith.constant 2 : index
    %c0_12 = arith.constant 0 : index
    %30 = vector.load %arg3[%c2, %c0_12] : memref<4x128xf32, #tpu.memory_space<vmem>>, vector<1x128xf32>
    %31 = vector.broadcast %30 : vector<1x128xf32> to vector<8x128xf32>
    %32 = arith.addf %29, %31 : vector<8x128xf32>
    %33 = arith.truncf %32 : vector<8x128xf32> to vector<8x128xbf16>
    %c0_13 = arith.constant 0 : index
    %c0_14 = arith.constant 0 : index
    %34 = vector.load %arg4[%c0_13, %c0_14] : memref<128x128xbf16, #tpu.memory_space<vmem>>, vector<128x128xbf16>
    %cst_15 = arith.constant dense<0.000000e+00> : vector<8x128xf32>
    %35 = tpu.matmul %33, %34, %cst_15 {dimension_numbers = #tpu.dot_dimension_numbers<[1], [0], [0], [1], [0, 0, 1, 1], [], []>} : vector<8x128xbf16>, vector<128x128xbf16>, vector<8x128xf32> -> vector<8x128xf32>
    %c3 = arith.constant 3 : index
    %c0_16 = arith.constant 0 : index
    %36 = vector.load %arg3[%c3, %c0_16] : memref<4x128xf32, #tpu.memory_space<vmem>>, vector<1x128xf32>
    %37 = vector.broadcast %36 : vector<1x128xf32> to vector<8x128xf32>
    %38 = arith.addf %35, %37 : vector<8x128xf32>
    %39 = vector.extract_strided_slice %38 {offsets = [0, 0], sizes = [8, 32], strides = [1, 1]} : vector<8x128xf32> to vector<8x32xf32>
    %c0_17 = arith.constant 0 : index
    %c0_18 = arith.constant 0 : index
    %40 = vector.load %arg5[%c0_17, %c0_18] : memref<8x32xf32, #tpu.memory_space<vmem>>, vector<8x32xf32>
    tpu.vector_store %arg5[%c0_17, %c0_18], %39 {strides = array<i32>} : memref<8x32xf32, #tpu.memory_space<vmem>>, vector<8x32xf32>,
    return
  }
  func.func @transform_0(%arg0: i32) -> (i32, i32) {
    %c0_i32 = arith.constant 0 : i32
    %c0_i32_0 = arith.constant 0 : i32
    return %arg0, %c0_i32 : i32, i32
  }
  func.func @transform_1(%arg0: i32) -> (i32, i32) {
    %c0_i32 = arith.constant 0 : i32
    %c0_i32_0 = arith.constant 0 : i32
    %c0_i32_1 = arith.constant 0 : i32
    return %c0_i32, %c0_i32_0 : i32, i32
  }
  func.func @transform_2(%arg0: i32) -> (i32, i32) {
    %c0_i32 = arith.constant 0 : i32
    %c0_i32_0 = arith.constant 0 : i32
    %c0_i32_1 = arith.constant 0 : i32
    return %c0_i32, %c0_i32_0 : i32, i32
  }
  func.func @transform_3(%arg0: i32) -> (i32, i32) {
    %c0_i32 = arith.constant 0 : i32
    %c0_i32_0 = arith.constant 0 : i32
    %c0_i32_1 = arith.constant 0 : i32
    return %c0_i32, %c0_i32_0 : i32, i32
  }
  func.func @transform_4(%arg0: i32) -> (i32, i32) {
    %c0_i32 = arith.constant 0 : i32
    %c0_i32_0 = arith.constant 0 : i32
    return %arg0, %c0_i32 : i32, i32
  }
}

module attributes {stable_mosaic.version = 11 : i64} {
  func.func @_decoder_block_kernel(%arg0: i32, %arg1: memref<8x32xf32, #tpu.memory_space<vmem>>, %arg2: memref<32x128xbf16, #tpu.memory_space<vmem>>, %arg3: memref<4x128xf32, #tpu.memory_space<vmem>>, %arg4: memref<128x128xbf16, #tpu.memory_space<vmem>>, %arg5: memref<8x32xf32, #tpu.memory_space<vmem>>) attributes {dimension_semantics = [#tpu.dimension_semantics<parallel>], iteration_bounds = array<i64: 2>, scalar_prefetch = 0 : i64, scratch_operands = 0 : i64, tpu.core_type = #tpu.core_type<tc>, window_params = [{transform_indices = @transform_0, window_bounds = array<i64: 8, 32>}, {pipeline_mode = #tpu.pipeline_mode<synchronous>, transform_indices = @transform_1, window_bounds = array<i64: 32, 128>}, {pipeline_mode = #tpu.pipeline_mode<synchronous>, transform_indices = @transform_2, window_bounds = array<i64: 4, 128>}, {pipeline_mode = #tpu.pipeline_mode<synchronous>, transform_indices = @transform_3, window_bounds = array<i64: 128, 128>}, {transform_indices = @transform_4, window_bounds = array<i64: 8, 32>}]} {
    %c0 = arith.constant 0 : index
    %c0_0 = arith.constant 0 : index
    %0 = vector.load %arg1[%c0, %c0_0] : memref<8x32xf32, #tpu.memory_space<vmem>>, vector<8x32xf32>
    %1 = arith.truncf %0 : vector<8x32xf32> to vector<8x32xbf16>
    %c0_1 = arith.constant 0 : index
    %c0_2 = arith.constant 0 : index
    %2 = vector.load %arg2[%c0_1, %c0_2] : memref<32x128xbf16, #tpu.memory_space<vmem>>, vector<32x128xbf16>
    %cst = arith.constant dense<0.000000e+00> : vector<8x128xf32>
    %3 = tpu.matmul %1, %2, %cst {dimension_numbers = #tpu.dot_dimension_numbers<[1], [0], [0], [1], [0, 0, 1, 1], [], []>} : vector<8x32xbf16>, vector<32x128xbf16>, vector<8x128xf32> -> vector<8x128xf32>
    %c0_3 = arith.constant 0 : index
    %c0_4 = arith.constant 0 : index
    %4 = vector.load %arg3[%c0_3, %c0_4] : memref<4x128xf32, #tpu.memory_space<vmem>>, vector<1x128xf32>
    %5 = vector.broadcast %4 : vector<1x128xf32> to vector<8x128xf32>
    %6 = arith.addf %3, %5 : vector<8x128xf32>
    %cst_5 = arith.constant 0.000000e+00 : f32
    %7 = vector.broadcast %cst_5 : f32 to vector<8x128xf32>
    %8 = arith.maximumf %6, %7 : vector<8x128xf32>
    %cst_6 = arith.constant dense<0.000000e+00> : vector<8xf32>
    %9 = vector.multi_reduction <add>, %8, %cst_6 [1] : vector<8x128xf32> to vector<8xf32>
    %10 = vector.shape_cast %9 : vector<8xf32> to vector<8x1xf32>
    %cst_7 = arith.constant 3.125000e-02 : f32
    %11 = vector.broadcast %cst_7 : f32 to vector<8x1xf32>
    %12 = arith.mulf %10, %11 : vector<8x1xf32>
    %13 = arith.mulf %8, %8 : vector<8x128xf32>
    %cst_8 = arith.constant dense<0.000000e+00> : vector<8xf32>
    %14 = vector.multi_reduction <add>, %13, %cst_8 [1] : vector<8x128xf32> to vector<8xf32>
    %15 = vector.shape_cast %14 : vector<8xf32> to vector<8x1xf32>
    %cst_9 = arith.constant 3.125000e-02 : f32
    %16 = vector.broadcast %cst_9 : f32 to vector<8x1xf32>
    %17 = arith.mulf %15, %16 : vector<8x1xf32>
    %18 = arith.mulf %12, %12 : vector<8x1xf32>
    %19 = arith.subf %17, %18 : vector<8x1xf32>
    %c1 = arith.constant 1 : index
    %c0_10 = arith.constant 0 : index
    %20 = vector.load %arg3[%c1, %c0_10] : memref<4x128xf32, #tpu.memory_space<vmem>>, vector<1x128xf32>
    %cst_11 = arith.constant 9.99999974E-6 : f32
    %21 = vector.broadcast %cst_11 : f32 to vector<8x1xf32>
    %22 = arith.addf %19, %21 : vector<8x1xf32>
    %23 = math.rsqrt %22 : vector<8x1xf32>
    %24 = vector.broadcast %20 : vector<1x128xf32> to vector<8x128xf32>
    %25 = vector.broadcast %23 : vector<8x1xf32> to vector<8x128xf32>
    %26 = arith.mulf %24, %25 : vector<8x128xf32>
    %27 = vector.broadcast %12 : vector<8x1xf32> to vector<8x128xf32>
    %28 = arith.subf %8, %27 : vector<8x128xf32>
    %29 = arith.mulf %28, %26 : vector<8x128xf32>
    %c2 = arith.constant 2 : index
    %c0_12 = arith.constant 0 : index
    %30 = vector.load %arg3[%c2, %c0_12] : memref<4x128xf32, #tpu.memory_space<vmem>>, vector<1x128xf32>
    %31 = vector.broadcast %30 : vector<1x128xf32> to vector<8x128xf32>
    %32 = arith.addf %29, %31 : vector<8x128xf32>
    %33 = arith.truncf %32 : vector<8x128xf32> to vector<8x128xbf16>
    %c0_13 = arith.constant 0 : index
    %c0_14 = arith.constant 0 : index
    %34 = vector.load %arg4[%c0_13, %c0_14] : memref<128x128xbf16, #tpu.memory_space<vmem>>, vector<128x128xbf16>
    %cst_15 = arith.constant dense<0.000000e+00> : vector<8x128xf32>
    %35 = tpu.matmul %33, %34, %cst_15 {dimension_numbers = #tpu.dot_dimension_numbers<[1], [0], [0], [1], [0, 0, 1, 1], [], []>} : vector<8x128xbf16>, vector<128x128xbf16>, vector<8x128xf32> -> vector<8x128xf32>
    %c3 = arith.constant 3 : index
    %c0_16 = arith.constant 0 : index
    %36 = vector.load %arg3[%c3, %c0_16] : memref<4x128xf32, #tpu.memory_space<vmem>>, vector<1x128xf32>
    %37 = vector.broadcast %36 : vector<1x128xf32> to vector<8x128xf32>
    %38 = arith.addf %35, %37 : vector<8x128xf32>
    %39 = vector.extract_strided_slice %38 {offsets = [0, 0], sizes = [8, 32], strides = [1, 1]} : vector<8x128xf32> to vector<8x32xf32>
    %c0_17 = arith.constant 0 : index
    %c0_18 = arith.constant 0 : index
    %40 = vector.load %arg5[%c0_17, %c0_18] : memref<8x32xf32, #tpu.memory_space<vmem>>, vector<8x32xf32>
    tpu.vector_store %arg5[%c0_17, %c0_18], %39 {strides = array<i32>} : memref<8x32xf32, #tpu.memory_space<vmem>>, vector<8x32xf32>,
    return
  }
  func.func @transform_0(%arg0: i32) -> (i32, i32) {
    %c0_i32 = arith.constant 0 : i32
    %c0_i32_0 = arith.constant 0 : i32
    return %arg0, %c0_i32 : i32, i32
  }
  func.func @transform_1(%arg0: i32) -> (i32, i32) {
    %c0_i32 = arith.constant 0 : i32
    %c0_i32_0 = arith.constant 0 : i32
    %c0_i32_1 = arith.constant 0 : i32
    return %c0_i32, %c0_i32_0 : i32, i32
  }
  func.func @transform_2(%arg0: i32) -> (i32, i32) {
    %c0_i32 = arith.constant 0 : i32
    %c0_i32_0 = arith.constant 0 : i32
    %c0_i32_1 = arith.constant 0 : i32
    return %c0_i32, %c0_i32_0 : i32, i32
  }
  func.func @transform_3(%arg0: i32) -> (i32, i32) {
    %c0_i32 = arith.constant 0 : i32
    %c0_i32_0 = arith.constant 0 : i32
    %c0_i32_1 = arith.constant 0 : i32
    return %c0_i32, %c0_i32_0 : i32, i32
  }
  func.func @transform_4(%arg0: i32) -> (i32, i32) {
    %c0_i32 = arith.constant 0 : i32
    %c0_i32_0 = arith.constant 0 : i32
    return %arg0, %c0_i32 : i32, i32
  }
}

</mosaic_0001>

<llo_original>
// kernel: decoder_block_forward.1
$region0: #{decoder_block_forward.1}
  #allocation0 [shape = 'u32[]', space=smem, size = 0x4, offset = 0x4, fixed_abs, tag = 'smem constant byte address 0x4 - core index']
  #allocation1 [shape = 'u32[144,128]{1,0:T(1,128)}', space=vmem, size = 0x12000, scoped, tag = 'internal scratch']
  %s0 = inlined_call_operand.hbm [shape: f32[16,32], index: 0, kind: input, shape index: {}]
  %s1 = inlined_call_operand.hbm [shape: bf16[32,128], index: 1, kind: input, shape index: {}]
  %s2 = inlined_call_operand.vmem [shape: f32[4,128], index: 2, kind: input, shape index: {}]
  %s3 = inlined_call_operand.hbm [shape: bf16[128,128], index: 3, kind: input, shape index: {}]
  %s4 = inlined_call_operand.hbm [shape: f32[16,32], index: 4, kind: output, shape index: {}]
  %s5 = sld [smem:[#allocation0]]
  $region61: #{decoder_block_forward.1} parent=0
    _
  %s7 = ssub.s32 1, %s5
  %s8 = scalar_select 0, %s7, %s5
  $region1: #{decoder_block_forward.1} parent=0
    #allocation2 [shape = 'u8[8192]{0}', space=vmem, size = 0x2000, scoped, tag = 'input window, operand 0']
    #allocation3 [shape = 's32[2]{0}', space=sflag, size = 0x8, scoped, tag = 'scoped memory for decoder_block_forward.1']
    #allocation4 [shape = 's32[2]{0}', space=sflag, size = 0x8, scoped, tag = 'scoped memory for decoder_block_forward.1']
    #allocation5 [shape = 'u8[8192]{0}', space=vmem, size = 0x2000, scoped, tag = 'input window, operand 1, single buffered']
    #allocation6 [shape = 's32[1]{0}', space=sflag, size = 0x4, scoped, tag = 'scoped memory for decoder_block_forward.1']
    #allocation7 [shape = 'u8[32768]{0}', space=vmem, size = 0x8000, scoped, tag = 'input window, operand 3, single buffered']
    #allocation8 [shape = 'u8[8192]{0}', space=vmem, size = 0x2000, scoped, tag = 'output window, operand 0']
    %9 = vsyncpa [#allocation3], 0
    %s10 = scalar_lea.sflag [#allocation3], 1
    %11 = vsyncpa %s10, 0
    %12 = vsyncpa [#allocation6], 0
    %13 = vsyncpa [#allocation4], 0
    %s14 = scalar_lea.sflag [#allocation4], 1
    %15 = vsyncpa %s14, 0
    loop: start=0, step=1, limit=4
    $region2: #{decoder_block_forward.1} parent=1 // loop_pre_header
      _
    $region3: #{decoder_block_forward.1} parent=1 // loop_header
      %s17 = sphi 0, %s21
      %p18 = scmp.ge.s32.totalorder %s17, 4
      %s27 = sphi 0, %s29
      %s30 = sphi 0, %s27
      %s31 = sphi 0, %s30
      %s47 = sphi 0, %s31
      %s51 = sphi 0, %s51
      %s53 = sphi 0, %s51
      %s54 = sphi 0, %s53
      %s68 = sphi 0, %s54
      %s72 = sphi 0, %s72
      %s74 = sphi 0, %s72
      %s75 = sphi 0, %s74
      %s89 = sphi 0, %s75
      %s93 = sphi 0, %s93
      %s95 = sphi 0, %s93
      %s96 = sphi 0, %s95
      %s110 = sphi 0, %s96
      %s116 = sphi 0, %s118
      %s119 = sphi 0, %s116
      %s120 = sphi 0, %s119
      %s136 = sphi 0, %s120
    $region4: #{decoder_block_forward.1} parent=1 // loop_header_branch
      %20 = sbr.rel (%p18) target = $region8
    $region5: #{decoder_block_forward.1} parent=1 // loop_body
      %s22 = ssub.s32 %s17, 1
      %s23 = ssub.s32 %s17, 2
      %s24 = sadd.s32 %s17, 1
      %s25 = ssub.s32 %s17, %s24
      %p26 = scmp.eq.s32.totalorder %s25, 0
      %s28 = sadd.s32 %s27, 1
      %s29 = scalar_select %p26, %s27, %s28
      %p32 = pneg %p26
      %p33 = scmp.eq.s32.totalorder %s17, 1
      %p34 = por %p32, %p33
      %p35 = scmp.ne.s32.totalorder %s27, %s30
      %p36 = scmp.eq.s32.totalorder %s17, 0
      %p37 = por %p35, %p36
      %p38 = scmp.ne.s32.totalorder %s27, %s30
      %p39 = scmp.eq.s32.totalorder %s22, 1
      %p40 = por %p38, %p39
      %p41 = scmp.ne.s32.totalorder %s30, %s31
      %p42 = scmp.eq.s32.totalorder %s22, 0
      %p43 = por %p41, %p42
      %p44 = scmp.ne.s32.totalorder %s30, %s31
      %p45 = scmp.eq.s32.totalorder %s23, 1
      %p46 = por %p44, %p45
      %p48 = scmp.ne.s32.totalorder %s31, %s47
      %p49 = scmp.eq.s32.totalorder %s23, 0
      %p50 = por %p48, %p49
      %s52 = sadd.s32 %s51, 1
      %p55 = scmp.eq.s32.totalorder %s17, 1
      %p56 = scmp.ne.s32.totalorder %s51, %s53
      %p57 = scmp.eq.s32.totalorder %s17, 0
      %p58 = por %p56, %p57
      %p59 = scmp.ne.s32.totalorder %s51, %s53
      %p60 = scmp.eq.s32.totalorder %s22, 1
      %p61 = por %p59, %p60
      %p62 = scmp.ne.s32.totalorder %s53, %s54
      %p63 = scmp.eq.s32.totalorder %s22, 0
      %p64 = por %p62, %p63
      %p65 = scmp.ne.s32.totalorder %s53, %s54
      %p66 = scmp.eq.s32.totalorder %s23, 1
      %p67 = por %p65, %p66
      %p69 = scmp.ne.s32.totalorder %s54, %s68
      %p70 = scmp.eq.s32.totalorder %s23, 0
      %p71 = por %p69, %p70
      %s73 = sadd.s32 %s72, 1
      %p76 = scmp.eq.s32.totalorder %s17, 1
      %p77 = scmp.ne.s32.totalorder %s72, %s74
      %p78 = scmp.eq.s32.totalorder %s17, 0
      %p79 = por %p77, %p78
      %p80 = scmp.ne.s32.totalorder %s72, %s74
      %p81 = scmp.eq.s32.totalorder %s22, 1
      %p82 = por %p80, %p81
      %p83 = scmp.ne.s32.totalorder %s74, %s75
      %p84 = scmp.eq.s32.totalorder %s22, 0
      %p85 = por %p83, %p84
      %p86 = scmp.ne.s32.totalorder %s74, %s75
      %p87 = scmp.eq.s32.totalorder %s23, 1
      %p88 = por %p86, %p87
      %p90 = scmp.ne.s32.totalorder %s75, %s89
      %p91 = scmp.eq.s32.totalorder %s23, 0
      %p92 = por %p90, %p91
      %s94 = sadd.s32 %s93, 1
      %p97 = scmp.eq.s32.totalorder %s17, 1
      %p98 = scmp.ne.s32.totalorder %s93, %s95
      %p99 = scmp.eq.s32.totalorder %s17, 0
      %p100 = por %p98, %p99
      %p101 = scmp.ne.s32.totalorder %s93, %s95
      %p102 = scmp.eq.s32.totalorder %s22, 1
      %p103 = por %p101, %p102
      %p104 = scmp.ne.s32.totalorder %s95, %s96
      %p105 = scmp.eq.s32.totalorder %s22, 0
      %p106 = por %p104, %p105
      %p107 = scmp.ne.s32.totalorder %s95, %s96
      %p108 = scmp.eq.s32.totalorder %s23, 1
      %p109 = por %p107, %p108
      %p111 = scmp.ne.s32.totalorder %s96, %s110
      %p112 = scmp.eq.s32.totalorder %s23, 0
      %p113 = por %p111, %p112
      %s114 = ssub.s32 %s17, %s24
      %p115 = scmp.eq.s32.totalorder %s114, 0
      %s117 = sadd.s32 %s116, 1
      %s118 = scalar_select %p115, %s116, %s117
      %p121 = pneg %p115
      %p122 = scmp.eq.s32.totalorder %s17, 1
      %p123 = por %p121, %p122
      %p124 = scmp.ne.s32.totalorder %s116, %s119
      %p125 = scmp.eq.s32.totalorder %s17, 0
      %p126 = por %p124, %p125
      %p127 = scmp.ne.s32.totalorder %s116, %s119
      %p128 = scmp.eq.s32.totalorder %s22, 1
      %p129 = por %p127, %p128
      %p130 = scmp.ne.s32.totalorder %s119, %s120
      %p131 = scmp.eq.s32.totalorder %s22, 0
      %p132 = por %p130, %p131
      %p133 = scmp.ne.s32.totalorder %s119, %s120
      %p134 = scmp.eq.s32.totalorder %s23, 1
      %p135 = por %p133, %p134
      %p137 = scmp.ne.s32.totalorder %s120, %s136
      %p138 = scmp.eq.s32.totalorder %s23, 0
      %p139 = por %p137, %p138
      %p140 = scmp.le.s32.totalorder 1, %s17
      %p141 = scmp.lt.s32.totalorder %s17, 3
      %p142 = pnand %p140, %p141
      %p143 = pneg %p142
      // Predicated region
      $region9: #{decoder_block_forward.1} parent=5 // pred_check
        _
      $region10: #{decoder_block_forward.1} parent=5 // pred_check_branch
        %145 = sbr.rel (%p142) target = $region12
      $region11: #{decoder_block_forward.1} parent=5 // pred_region
        %s146 = ssub.s32 %s17, 1
        // Predicated region
        $region13: #{decoder_block_forward.1} parent=11 // pred_check
          %p147 = pneg %p64
        $region14: #{decoder_block_forward.1} parent=11 // pred_check_branch
          %149 = sbr.rel (%p147) target = $region16
        $region15: #{decoder_block_forward.1} parent=11 // pred_region
          %s151 = ssub.s32 256, 256
          %152 = vsyncadd [#allocation6], %s151
          %s153 = sshll.u32 [#allocation5], 4
          %s154 = int_to_ptr.vmem [resolvable:$true] %s153
          %159 = dma.hbm_to_vmem [thread:$0]  %s1, 256, %s154, [#allocation6], 64, 64, 4
        $region16: #{decoder_block_forward.1} parent=11 // pred_fallthru
          _
        // Predicated region
        $region17: #{decoder_block_forward.1} parent=11 // pred_check
          %p160 = pneg %p85
        $region18: #{decoder_block_forward.1} parent=11 // pred_check_branch
          %162 = sbr.rel (%p160) target = $region20
        $region19: #{decoder_block_forward.1} parent=11 // pred_region
          _
        $region20: #{decoder_block_forward.1} parent=11 // pred_fallthru
          _
        // Predicated region
        $region21: #{decoder_block_forward.1} parent=11 // pred_check
          %p163 = pneg %p106
        $region22: #{decoder_block_forward.1} parent=11 // pred_check_branch
          %165 = sbr.rel (%p163) target = $region24
        $region23: #{decoder_block_forward.1} parent=11 // pred_region
          %s167 = ssub.s32 1024, 1024
          %168 = vsyncadd [#allocation6], %s167
          %s169 = sshll.u32 [#allocation7], 4
          %s170 = int_to_ptr.vmem [resolvable:$true] %s169
          %175 = dma.hbm_to_vmem [thread:$0]  %s3, 1024, %s170, [#allocation6], 64, 64, 4
        $region24: #{decoder_block_forward.1} parent=11 // pred_fallthru
          _
      $region12: #{decoder_block_forward.1} parent=5 // pred_fallthru
        _
      %p176 = scmp.lt.s32.totalorder %s17, 2
      // Predicated region
      $region25: #{decoder_block_forward.1} parent=5 // pred_check
        %p177 = pneg %p176
      $region26: #{decoder_block_forward.1} parent=5 // pred_check_branch
        %179 = sbr.rel (%p177) target = $region28
      $region27: #{decoder_block_forward.1} parent=5 // pred_region
        // Predicated region
        $region29: #{decoder_block_forward.1} parent=27 // pred_check
          %p180 = pneg %p37
        $region30: #{decoder_block_forward.1} parent=27 // pred_check_branch
          %182 = sbr.rel (%p180) target = $region32
        $region31: #{decoder_block_forward.1} parent=27 // pred_region
          %s183 = sand.u32 %s27, 1
          %s184 = scalar_lea.sflag [#allocation3], %s183
          %s185 = sand.u32 %s27, 1
          %s186 = smul.addr %s185, 8
          %s187 = scalar_lea.vmem [#allocation2], %s186
          %s189 = ssub.s32 128, 128
          %190 = vsyncadd %s184, %s189
          %s191 = smul.addr %s17, 128
          %s192 = scalar_lea.hbm %s0, %s191
          %s194 = sshll.u32 %s187, 4
          %s195 = int_to_ptr.vmem [resolvable:$true] %s194
          %197 = dma.hbm_to_vmem [thread:$0]  %s192, 128, %s195, %s184
        $region32: #{decoder_block_forward.1} parent=27 // pred_fallthru
          _
      $region28: #{decoder_block_forward.1} parent=5 // pred_fallthru
        _
      %p198 = scmp.le.s32.totalorder 1, %s17
      %p199 = scmp.lt.s32.totalorder %s17, 3
      %p200 = pnand %p198, %p199
      %p201 = pneg %p200
      // Predicated region
      $region33: #{decoder_block_forward.1} parent=5 // pred_check
        _
      $region34: #{decoder_block_forward.1} parent=5 // pred_check_branch
        %203 = sbr.rel (%p200) target = $region36
      $region35: #{decoder_block_forward.1} parent=5 // pred_region
        %s204 = ssub.s32 %s17, 1
        %s205 = sand.u32 %s30, 1
        %s206 = scalar_lea.sflag [#allocation3], %s205
        %s207 = sand.u32 %s30, 1
        %s208 = smul.addr %s207, 8
        %s209 = scalar_lea.vmem [#allocation2], %s208
        // Predicated region
        $region37: #{decoder_block_forward.1} parent=35 // pred_check
          %p210 = pneg %p43
        $region38: #{decoder_block_forward.1} parent=35 // pred_check_branch
          %212 = sbr.rel (%p210) target = $region40
        $region39: #{decoder_block_forward.1} parent=35 // pred_region
          %213 = dma.done %s206, 128
        $region40: #{decoder_block_forward.1} parent=35 // pred_fallthru
          _
        // Predicated region
        $region41: #{decoder_block_forward.1} parent=35 // pred_check
          %p214 = pneg %p64
        $region42: #{decoder_block_forward.1} parent=35 // pred_check_branch
          %216 = sbr.rel (%p214) target = $region44
        $region43: #{decoder_block_forward.1} parent=35 // pred_region
          %217 = dma.done [#allocation6], 256
        $region44: #{decoder_block_forward.1} parent=35 // pred_fallthru
          _
        // Predicated region
        $region45: #{decoder_block_forward.1} parent=35 // pred_check
          %p218 = pneg %p106
        $region46: #{decoder_block_forward.1} parent=35 // pred_check_branch
          %220 = sbr.rel (%p218) target = $region48
        $region47: #{decoder_block_forward.1} parent=35 // pred_region
          %221 = dma.done [#allocation6], 1024
        $region48: #{decoder_block_forward.1} parent=35 // pred_fallthru
          _
        %s222 = sand.u32 %s30, 1
        %s223 = scalar_lea.sflag [#allocation3], %s222
        %s224 = sand.u32 %s30, 1
        %s225 = smul.addr %s224, 8
        %s226 = scalar_lea.vmem [#allocation2], %s225
        %p227 = pneg %p43
        %p228 = pneg %p40
        %p229 = pneg %p64
        %p230 = pneg %p61
        %p231 = pneg %p85
        %p232 = pneg %p82
        %p233 = pneg %p106
        %p234 = pneg %p103
        %p235 = pneg %p132
        %p236 = pneg %p129
        %s237 = sand.u32 %s119, 1
        %s238 = scalar_lea.sflag [#allocation4], %s237
        %s239 = sand.u32 %s119, 1
        %s240 = smul.addr %s239, 8
        %s241 = scalar_lea.vmem [#allocation8], %s240
        %v243 = vld [vmem:[%s209] sm:$0xff]
        %v244 = vpack.c.bf16 %v243, %v243
        %v245 = vld [vmem:[#allocation5] sm:$0xf]
        %v246 = vld [vmem:[#allocation5 + $0x4] sm:$0xf]
        %v247 = vld [vmem:[#allocation5 + $0x8] sm:$0xf]
        %v248 = vld [vmem:[#allocation5 + $0xc] sm:$0xf]
        %v249 = vld [vmem:[%s2] sm:$0x1]
        %v250 = vlaneseq
        %v251 = vshrl.u32 %v250, 7
        %v252 = vsub.s32 0, %v251
        %v253 = vrot.slane %v249, %v252
        %v258 = vunpack.c.l.b16 %v245
        %v259 = vunpack.c.l.b16 %v246
        %v260 = vunpack.c.l.b16 %v247
        %v261 = vunpack.c.l.b16 %v248
        %v262 = vpack.c.b16 %v259, %v258
        %v263 = vpack.c.b16 %v261, %v260
        %vm266 = vcmask 261120
        %v268 = vsel %vm266, %v244, 0
        %270 = vmatprep.subr.bf16.mxu0 0
        %271 = vmatpush1.bf16.msra.mxu0 0
        %272 = vmatprep.subr.bf16.mxu0 0
        %273 = vmatpush1.bf16.msra.mxu0 0
        %274 = vmatprep.subr.bf16.mxu0 0
        %275 = vmatpush1.bf16.msra.mxu0 0
        %276 = vmatprep.subr.bf16.mxu0 0
        %277 = vmatpush1.bf16.msra.mxu0 0
        %278 = vmatprep.subr.bf16.mxu0 0
        %279 = vmatpush1.bf16.msra.mxu0 0
        %280 = vmatprep.subr.bf16.mxu0 0
        %281 = vmatpush1.bf16.msra.mxu0 0
        %282 = vmatprep.subr.bf16.mxu0 0
        %283 = vmatpush1.bf16.msra.mxu0 %v263
        %284 = vmatprep.subr.bf16.mxu0 0
        %285 = vmatpush1.bf16.msra.mxu0 %v262
        %286 = vmatprep.subr.bf16.mxu0 0
        %287 = vmatpush2.bf16.msra.mxu0 0
        %288 = vmatprep.subr.bf16.mxu0 0
        %289 = vmatpush2.bf16.msra.mxu0 0
        %290 = vmatprep.subr.bf16.mxu0 0
        %291 = vmatpush2.bf16.msra.mxu0 0
        %292 = vmatprep.subr.bf16.mxu0 0
        %293 = vmatpush2.bf16.msra.mxu0 0
        %294 = vmatprep.subr.bf16.mxu0 0
        %295 = vmatpush2.bf16.msra.mxu0 0
        %296 = vmatprep.subr.bf16.mxu0 0
        %297 = vmatpush2.bf16.msra.mxu0 0
        %298 = vmatprep.subr.bf16.mxu0 0
        %299 = vmatpush2.bf16.msra.mxu0 0
        %300 = vmatprep.subr.bf16.mxu0 0
        %301 = vmatpush2.bf16.msra.mxu0 0
        %302 = vmatprep.mubr.bf16.mxu0 0
        %303 = vmatmul.mubr.bf16.gmra.mxu0 %v268
        %v304 = vpop.f32.mrf.mxu0
        %v305 = vadd.f32 %v253, %v304
        %v306 = vpop.f32.mrf.mxu0
        %v307 = vpop.f32.mrf.mxu0
        %v308 = vpop.f32.mrf.mxu0
        %309 = vdwg.mxu0
        %v310 = vmax.f32 %v305, 0.0
        %311 = vadd.xlane.f32.xlu0 %v310
        %v312 = vpop.xlane.xlu0 %311
        %v313 = vmul.f32 %v312, 0.03125
        %v314 = vmul.f32 %v310, %v310
        %315 = vadd.xlane.f32.xlu0 %v314
        %v316 = vpop.xlane.xlu0 %315
        %v317 = vmul.f32 %v316, 0.03125
        %v318 = vmul.f32 %v313, %v313
        %v319 = vsub.f32 %v317, %v318
        %v320 = vld [vmem:[%s2 + $0x1] sm:$0x1]
        %v321 = vadd.f32 %v319, 1e-05
        %v322 = vrsqrt.pop %v321
        %v323 = vlaneseq
        %v324 = vshrl.u32 %v323, 7
        %v325 = vsub.s32 0, %v324
        %v326 = vrot.slane %v320, %v325
        %v327 = vmul.f32 %v326, %v322
        %v328 = vsub.f32 %v310, %v313
        %v329 = vmul.f32 %v328, %v327
        %v330 = vld [vmem:[%s2 + $0x2] sm:$0x1]
        %v331 = vlaneseq
        %v332 = vshrl.u32 %v331, 7
        %v333 = vsub.s32 0, %v332
        %v334 = vrot.slane %v330, %v333
        %v335 = vadd.f32 %v329, %v334
        %v336 = vpack.c.bf16 %v335, %v335
        %v337 = vld [vmem:[#allocation7] sm:$0xf]
        %v338 = vld [vmem:[#allocation7 + $0x4] sm:$0xf]
        %v339 = vld [vmem:[#allocation7 + $0x8] sm:$0xf]
        %v340 = vld [vmem:[#allocation7 + $0xc] sm:$0xf]
        %v341 = vld [vmem:[#allocation7 + $0x10] sm:$0xf]
        %v342 = vld [vmem:[#allocation7 + $0x14] sm:$0xf]
        %v343 = vld [vmem:[#allocation7 + $0x18] sm:$0xf]
        %v344 = vld [vmem:[#allocation7 + $0x1c] sm:$0xf]
        %v345 = vld [vmem:[#allocation7 + $0x20] sm:$0xf]
        %v346 = vld [vmem:[#allocation7 + $0x24] sm:$0xf]
        %v347 = vld [vmem:[#allocation7 + $0x28] sm:$0xf]
        %v348 = vld [vmem:[#allocation7 + $0x2c] sm:$0xf]
        %v349 = vld [vmem:[#allocation7 + $0x30] sm:$0xf]
        %v350 = vld [vmem:[#allocation7 + $0x34] sm:$0xf]
        %v351 = vld [vmem:[#allocation7 + $0x38] sm:$0xf]
        %v352 = vld [vmem:[#allocation7 + $0x3c] sm:$0xf]
        %v353 = vld [vmem:[%s2 + $0x3] sm:$0x1]
        %v354 = vlaneseq
        %v355 = vshrl.u32 %v354, 7
        %v356 = vsub.s32 0, %v355
        %v357 = vrot.slane %v353, %v356
        %v374 = vunpack.c.l.b16 %v337
        %v375 = vunpack.c.l.b16 %v338
        %v376 = vunpack.c.l.b16 %v339
        %v377 = vunpack.c.l.b16 %v340
        %v378 = vunpack.c.l.b16 %v341
        %v379 = vunpack.c.l.b16 %v342
        %v380 = vunpack.c.l.b16 %v343
        %v381 = vunpack.c.l.b16 %v344
        %v382 = vunpack.c.l.b16 %v345
        %v383 = vunpack.c.l.b16 %v346
        %v384 = vunpack.c.l.b16 %v347
        %v385 = vunpack.c.l.b16 %v348
        %v386 = vunpack.c.l.b16 %v349
        %v387 = vunpack.c.l.b16 %v350
        %v388 = vunpack.c.l.b16 %v351
        %v389 = vunpack.c.l.b16 %v352
        %v390 = vpack.c.b16 %v375, %v374
        %v391 = vpack.c.b16 %v377, %v376
        %v392 = vpack.c.b16 %v379, %v378
        %v393 = vpack.c.b16 %v381, %v380
        %v394 = vpack.c.b16 %v383, %v382
        %v395 = vpack.c.b16 %v385, %v384
        %v396 = vpack.c.b16 %v387, %v386
        %v397 = vpack.c.b16 %v389, %v388
        %406 = vmatprep.subr.bf16.mxu0 0
        %407 = vmatpush1.bf16.msra.mxu0 %v397
        %408 = vmatprep.subr.bf16.mxu0 0
        %409 = vmatpush1.bf16.msra.mxu0 %v396
        %410 = vmatprep.subr.bf16.mxu0 0
        %411 = vmatpush1.bf16.msra.mxu0 %v395
        %412 = vmatprep.subr.bf16.mxu0 0
        %413 = vmatpush1.bf16.msra.mxu0 %v394
        %414 = vmatprep.subr.bf16.mxu0 0
        %415 = vmatpush1.bf16.msra.mxu0 %v393
        %416 = vmatprep.subr.bf16.mxu0 0
        %417 = vmatpush1.bf16.msra.mxu0 %v392
        %418 = vmatprep.subr.bf16.mxu0 0
        %419 = vmatpush1.bf16.msra.mxu0 %v391
        %420 = vmatprep.subr.bf16.mxu0 0
        %421 = vmatpush1.bf16.msra.mxu0 %v390
        %422 = vmatprep.subr.bf16.mxu0 0
        %423 = vmatpush2.bf16.msra.mxu0 0
        %424 = vmatprep.subr.bf16.mxu0 0
        %425 = vmatpush2.bf16.msra.mxu0 0
        %426 = vmatprep.subr.bf16.mxu0 0
        %427 = vmatpush2.bf16.msra.mxu0 0
        %428 = vmatprep.subr.bf16.mxu0 0
        %429 = vmatpush2.bf16.msra.mxu0 0
        %430 = vmatprep.subr.bf16.mxu0 0
        %431 = vmatpush2.bf16.msra.mxu0 0
        %432 = vmatprep.subr.bf16.mxu0 0
        %433 = vmatpush2.bf16.msra.mxu0 0
        %434 = vmatprep.subr.bf16.mxu0 0
        %435 = vmatpush2.bf16.msra.mxu0 0
        %436 = vmatprep.subr.bf16.mxu0 0
        %437 = vmatpush2.bf16.msra.mxu0 0
        %438 = vmatprep.mubr.bf16.mxu0 0
        %439 = vmatmul.mubr.bf16.gmra.mxu0 %v336
        %v440 = vpop.f32.mrf.mxu0
        %v441 = vadd.f32 %v357, %v440
        %v442 = vpop.f32.mrf.mxu0
        %v443 = vpop.f32.mrf.mxu0
        %v444 = vpop.f32.mrf.mxu0
        %445 = vdwg.mxu0
        %446 = vst.msk [vmem:[%s241] sm:$0xff] %vm266, %v441
        %s447 = sand.u32 %s119, 1
        %s448 = scalar_lea.sflag [#allocation4], %s447
        %s449 = sand.u32 %s119, 1
        %s450 = smul.addr %s449, 8
        %s451 = scalar_lea.vmem [#allocation8], %s450
        // Predicated region
        $region49: #{decoder_block_forward.1} parent=35 // pred_check
          %p452 = pneg %p129
        $region50: #{decoder_block_forward.1} parent=35 // pred_check_branch
          %454 = sbr.rel (%p452) target = $region52
        $region51: #{decoder_block_forward.1} parent=35 // pred_region
          %s456 = ssub.s32 128, 128
          %457 = vsyncadd %s448, %s456
          %s458 = smul.addr %s22, 128
          %s459 = scalar_lea.hbm %s4, %s458
          %s461 = sshll.u32 %s451, 4
          %s462 = int_to_ptr.vmem [resolvable:$true] %s461
          %464 = dma.vmem_to_hbm [thread:$0]  %s462, 128, %s459, %s448
        $region52: #{decoder_block_forward.1} parent=35 // pred_fallthru
          _
      $region36: #{decoder_block_forward.1} parent=5 // pred_fallthru
        _
      %p465 = scmp.le.s32.totalorder 2, %s17
      // Predicated region
      $region53: #{decoder_block_forward.1} parent=5 // pred_check
        %p466 = pneg %p465
      $region54: #{decoder_block_forward.1} parent=5 // pred_check_branch
        %468 = sbr.rel (%p466) target = $region56
      $region55: #{decoder_block_forward.1} parent=5 // pred_region
        %s469 = ssub.s32 %s17, 2
        // Predicated region
        $region57: #{decoder_block_forward.1} parent=55 // pred_check
          %p470 = pneg %p135
        $region58: #{decoder_block_forward.1} parent=55 // pred_check_branch
          %472 = sbr.rel (%p470) target = $region60
        $region59: #{decoder_block_forward.1} parent=55 // pred_region
          %s473 = sand.u32 %s120, 1
          %s474 = scalar_lea.sflag [#allocation4], %s473
          %s475 = sand.u32 %s120, 1
          %s476 = smul.addr %s475, 8
          %s477 = scalar_lea.vmem [#allocation8], %s476
          %478 = dma.done %s474, 128
        $region60: #{decoder_block_forward.1} parent=55 // pred_fallthru
          _
      $region56: #{decoder_block_forward.1} parent=5 // pred_fallthru
        _
    $region6: #{decoder_block_forward.1} parent=1 // loop_footer
      %s21 = sadd.s32 1, %s17
    $region7: #{decoder_block_forward.1} parent=1 // loop_footer_branch
      %16 = sbr.rel target = $region3
    $region8: #{decoder_block_forward.1} parent=1 // loop_exit
      _
    %479 = vsyncpa [#allocation3], 1
    %s480 = scalar_lea.sflag [#allocation3], 1
    %481 = vsyncpa %s480, 1
    %482 = vsyncpa [#allocation6], 1
    %483 = vsyncpa [#allocation4], 1
    %s484 = scalar_lea.sflag [#allocation4], 1
    %485 = vsyncpa %s484, 1

// kernel: decoder_block_forward.1
$region0: #{decoder_block_forward.1}
  #allocation0 [shape = 'u32[]', space=smem, size = 0x4, offset = 0x4, fixed_abs, tag = 'smem constant byte address 0x4 - core index']
  #allocation1 [shape = 'u32[144,128]{1,0:T(1,128)}', space=vmem, size = 0x12000, scoped, tag = 'internal scratch']
  %s0 = inlined_call_operand.hbm [shape: f32[16,32], index: 0, kind: input, shape index: {}]
  %s1 = inlined_call_operand.hbm [shape: bf16[32,128], index: 1, kind: input, shape index: {}]
  %s2 = inlined_call_operand.vmem [shape: f32[4,128], index: 2, kind: input, shape index: {}]
  %s3 = inlined_call_operand.hbm [shape: bf16[128,128], index: 3, kind: input, shape index: {}]
  %s4 = inlined_call_operand.hbm [shape: f32[16,32], index: 4, kind: output, shape index: {}]
  %s5 = sld [smem:[#allocation0]]
  $region61: #{decoder_block_forward.1} parent=0
    _
  %s7 = ssub.s32 1, %s5
  %s8 = scalar_select 0, %s7, %s5
  $region1: #{decoder_block_forward.1} parent=0
    #allocation2 [shape = 'u8[8192]{0}', space=vmem, size = 0x2000, scoped, tag = 'input window, operand 0']
    #allocation3 [shape = 's32[2]{0}', space=sflag, size = 0x8, scoped, tag = 'scoped memory for decoder_block_forward.1']
    #allocation4 [shape = 's32[2]{0}', space=sflag, size = 0x8, scoped, tag = 'scoped memory for decoder_block_forward.1']
    #allocation5 [shape = 'u8[8192]{0}', space=vmem, size = 0x2000, scoped, tag = 'input window, operand 1, single buffered']
    #allocation6 [shape = 's32[1]{0}', space=sflag, size = 0x4, scoped, tag = 'scoped memory for decoder_block_forward.1']
    #allocation7 [shape = 'u8[32768]{0}', space=vmem, size = 0x8000, scoped, tag = 'input window, operand 3, single buffered']
    #allocation8 [shape = 'u8[8192]{0}', space=vmem, size = 0x2000, scoped, tag = 'output window, operand 0']
    %9 = vsyncpa [#allocation3], 0
    %s10 = scalar_lea.sflag [#allocation3], 1
    %11 = vsyncpa %s10, 0
    %12 = vsyncpa [#allocation6], 0
    %13 = vsyncpa [#allocation4], 0
    %s14 = scalar_lea.sflag [#allocation4], 1
    %15 = vsyncpa %s14, 0
    loop: start=0, step=1, limit=4
    $region2: #{decoder_block_forward.1} parent=1 // loop_pre_header
      _
    $region3: #{decoder_block_forward.1} parent=1 // loop_header
      %s17 = sphi 0, %s21
      %p18 = scmp.ge.s32.totalorder %s17, 4
      %s27 = sphi 0, %s29
      %s30 = sphi 0, %s27
      %s31 = sphi 0, %s30
      %s47 = sphi 0, %s31
      %s51 = sphi 0, %s51
      %s53 = sphi 0, %s51
      %s54 = sphi 0, %s53
      %s68 = sphi 0, %s54
      %s72 = sphi 0, %s72
      %s74 = sphi 0, %s72
      %s75 = sphi 0, %s74
      %s89 = sphi 0, %s75
      %s93 = sphi 0, %s93
      %s95 = sphi 0, %s93
      %s96 = sphi 0, %s95
      %s110 = sphi 0, %s96
      %s116 = sphi 0, %s118
      %s119 = sphi 0, %s116
      %s120 = sphi 0, %s119
      %s136 = sphi 0, %s120
    $region4: #{decoder_block_forward.1} parent=1 // loop_header_branch
      %20 = sbr.rel (%p18) target = $region8
    $region5: #{decoder_block_forward.1} parent=1 // loop_body
      %s22 = ssub.s32 %s17, 1
      %s23 = ssub.s32 %s17, 2
      %s24 = sadd.s32 %s17, 1
      %s25 = ssub.s32 %s17, %s24
      %p26 = scmp.eq.s32.totalorder %s25, 0
      %s28 = sadd.s32 %s27, 1
      %s29 = scalar_select %p26, %s27, %s28
      %p32 = pneg %p26
      %p33 = scmp.eq.s32.totalorder %s17, 1
      %p34 = por %p32, %p33
      %p35 = scmp.ne.s32.totalorder %s27, %s30
      %p36 = scmp.eq.s32.totalorder %s17, 0
      %p37 = por %p35, %p36
      %p38 = scmp.ne.s32.totalorder %s27, %s30
      %p39 = scmp.eq.s32.totalorder %s22, 1
      %p40 = por %p38, %p39
      %p41 = scmp.ne.s32.totalorder %s30, %s31
      %p42 = scmp.eq.s32.totalorder %s22, 0
      %p43 = por %p41, %p42
      %p44 = scmp.ne.s32.totalorder %s30, %s31
      %p45 = scmp.eq.s32.totalorder %s23, 1
      %p46 = por %p44, %p45
      %p48 = scmp.ne.s32.totalorder %s31, %s47
      %p49 = scmp.eq.s32.totalorder %s23, 0
      %p50 = por %p48, %p49
      %s52 = sadd.s32 %s51, 1
      %p55 = scmp.eq.s32.totalorder %s17, 1
      %p56 = scmp.ne.s32.totalorder %s51, %s53
      %p57 = scmp.eq.s32.totalorder %s17, 0
      %p58 = por %p56, %p57
      %p59 = scmp.ne.s32.totalorder %s51, %s53
      %p60 = scmp.eq.s32.totalorder %s22, 1
      %p61 = por %p59, %p60
      %p62 = scmp.ne.s32.totalorder %s53, %s54
      %p63 = scmp.eq.s32.totalorder %s22, 0
      %p64 = por %p62, %p63
      %p65 = scmp.ne.s32.totalorder %s53, %s54
      %p66 = scmp.eq.s32.totalorder %s23, 1
      %p67 = por %p65, %p66
      %p69 = scmp.ne.s32.totalorder %s54, %s68
      %p70 = scmp.eq.s32.totalorder %s23, 0
      %p71 = por %p69, %p70
      %s73 = sadd.s32 %s72, 1
      %p76 = scmp.eq.s32.totalorder %s17, 1
      %p77 = scmp.ne.s32.totalorder %s72, %s74
      %p78 = scmp.eq.s32.totalorder %s17, 0
      %p79 = por %p77, %p78
      %p80 = scmp.ne.s32.totalorder %s72, %s74
      %p81 = scmp.eq.s32.totalorder %s22, 1
      %p82 = por %p80, %p81
      %p83 = scmp.ne.s32.totalorder %s74, %s75
      %p84 = scmp.eq.s32.totalorder %s22, 0
      %p85 = por %p83, %p84
      %p86 = scmp.ne.s32.totalorder %s74, %s75
      %p87 = scmp.eq.s32.totalorder %s23, 1
      %p88 = por %p86, %p87
      %p90 = scmp.ne.s32.totalorder %s75, %s89
      %p91 = scmp.eq.s32.totalorder %s23, 0
      %p92 = por %p90, %p91
      %s94 = sadd.s32 %s93, 1
      %p97 = scmp.eq.s32.totalorder %s17, 1
      %p98 = scmp.ne.s32.totalorder %s93, %s95
      %p99 = scmp.eq.s32.totalorder %s17, 0
      %p100 = por %p98, %p99
      %p101 = scmp.ne.s32.totalorder %s93, %s95
      %p102 = scmp.eq.s32.totalorder %s22, 1
      %p103 = por %p101, %p102
      %p104 = scmp.ne.s32.totalorder %s95, %s96
      %p105 = scmp.eq.s32.totalorder %s22, 0
      %p106 = por %p104, %p105
      %p107 = scmp.ne.s32.totalorder %s95, %s96
      %p108 = scmp.eq.s32.totalorder %s23, 1
      %p109 = por %p107, %p108
      %p111 = scmp.ne.s32.totalorder %s96, %s110
      %p112 = scmp.eq.s32.totalorder %s23, 0
      %p113 = por %p111, %p112
      %s114 = ssub.s32 %s17, %s24
      %p115 = scmp.eq.s32.totalorder %s114, 0
      %s117 = sadd.s32 %s116, 1
      %s118 = scalar_select %p115, %s116, %s117
      %p121 = pneg %p115
      %p122 = scmp.eq.s32.totalorder %s17, 1
      %p123 = por %p121, %p122
      %p124 = scmp.ne.s32.totalorder %s116, %s119
      %p125 = scmp.eq.s32.totalorder %s17, 0
      %p126 = por %p124, %p125
      %p127 = scmp.ne.s32.totalorder %s116, %s119
      %p128 = scmp.eq.s32.totalorder %s22, 1
      %p129 = por %p127, %p128
      %p130 = scmp.ne.s32.totalorder %s119, %s120
      %p131 = scmp.eq.s32.totalorder %s22, 0
      %p132 = por %p130, %p131
      %p133 = scmp.ne.s32.totalorder %s119, %s120
      %p134 = scmp.eq.s32.totalorder %s23, 1
      %p135 = por %p133, %p134
      %p137 = scmp.ne.s32.totalorder %s120, %s136
      %p138 = scmp.eq.s32.totalorder %s23, 0
      %p139 = por %p137, %p138
      %p140 = scmp.le.s32.totalorder 1, %s17
      %p141 = scmp.lt.s32.totalorder %s17, 3
      %p142 = pnand %p140, %p141
      %p143 = pneg %p142
      // Predicated region
      $region9: #{decoder_block_forward.1} parent=5 // pred_check
        _
      $region10: #{decoder_block_forward.1} parent=5 // pred_check_branch
        %145 = sbr.rel (%p142) target = $region12
      $region11: #{decoder_block_forward.1} parent=5 // pred_region
        %s146 = ssub.s32 %s17, 1
        // Predicated region
        $region13: #{decoder_block_forward.1} parent=11 // pred_check
          %p147 = pneg %p64
        $region14: #{decoder_block_forward.1} parent=11 // pred_check_branch
          %149 = sbr.rel (%p147) target = $region16
        $region15: #{decoder_block_forward.1} parent=11 // pred_region
          %s151 = ssub.s32 256, 256
          %152 = vsyncadd [#allocation6], %s151
          %s153 = sshll.u32 [#allocation5], 4
          %s154 = int_to_ptr.vmem [resolvable:$true] %s153
          %159 = dma.hbm_to_vmem [thread:$0]  %s1, 256, %s154, [#allocation6], 64, 64, 4
        $region16: #{decoder_block_forward.1} parent=11 // pred_fallthru
          _
        // Predicated region
        $region17: #{decoder_block_forward.1} parent=11 // pred_check
          %p160 = pneg %p85
        $region18: #{decoder_block_forward.1} parent=11 // pred_check_branch
          %162 = sbr.rel (%p160) target = $region20
        $region19: #{decoder_block_forward.1} parent=11 // pred_region
          _
        $region20: #{decoder_block_forward.1} parent=11 // pred_fallthru
          _
        // Predicated region
        $region21: #{decoder_block_forward.1} parent=11 // pred_check
          %p163 = pneg %p106
        $region22: #{decoder_block_forward.1} parent=11 // pred_check_branch
          %165 = sbr.rel (%p163) target = $region24
        $region23: #{decoder_block_forward.1} parent=11 // pred_region
          %s167 = ssub.s32 1024, 1024
          %168 = vsyncadd [#allocation6], %s167
          %s169 = sshll.u32 [#allocation7], 4
          %s170 = int_to_ptr.vmem [resolvable:$true] %s169
          %175 = dma.hbm_to_vmem [thread:$0]  %s3, 1024, %s170, [#allocation6], 64, 64, 4
        $region24: #{decoder_block_forward.1} parent=11 // pred_fallthru
          _
      $region12: #{decoder_block_forward.1} parent=5 // pred_fallthru
        _
      %p176 = scmp.lt.s32.totalorder %s17, 2
      // Predicated region
      $region25: #{decoder_block_forward.1} parent=5 // pred_check
        %p177 = pneg %p176
      $region26: #{decoder_block_forward.1} parent=5 // pred_check_branch
        %179 = sbr.rel (%p177) target = $region28
      $region27: #{decoder_block_forward.1} parent=5 // pred_region
        // Predicated region
        $region29: #{decoder_block_forward.1} parent=27 // pred_check
          %p180 = pneg %p37
        $region30: #{decoder_block_forward.1} parent=27 // pred_check_branch
          %182 = sbr.rel (%p180) target = $region32
        $region31: #{decoder_block_forward.1} parent=27 // pred_region
          %s183 = sand.u32 %s27, 1
          %s184 = scalar_lea.sflag [#allocation3], %s183
          %s185 = sand.u32 %s27, 1
          %s186 = smul.addr %s185, 8
          %s187 = scalar_lea.vmem [#allocation2], %s186
          %s189 = ssub.s32 128, 128
          %190 = vsyncadd %s184, %s189
          %s191 = smul.addr %s17, 128
          %s192 = scalar_lea.hbm %s0, %s191
          %s194 = sshll.u32 %s187, 4
          %s195 = int_to_ptr.vmem [resolvable:$true] %s194
          %197 = dma.hbm_to_vmem [thread:$0]  %s192, 128, %s195, %s184
        $region32: #{decoder_block_forward.1} parent=27 // pred_fallthru
          _
      $region28: #{decoder_block_forward.1} parent=5 // pred_fallthru
        _
      %p198 = scmp.le.s32.totalorder 1, %s17
      %p199 = scmp.lt.s32.totalorder %s17, 3
      %p200 = pnand %p198, %p199
      %p201 = pneg %p200
      // Predicated region
      $region33: #{decoder_block_forward.1} parent=5 // pred_check
        _
      $region34: #{decoder_block_forward.1} parent=5 // pred_check_branch
        %203 = sbr.rel (%p200) target = $region36
      $region35: #{decoder_block_forward.1} parent=5 // pred_region
        %s204 = ssub.s32 %s17, 1
        %s205 = sand.u32 %s30, 1
        %s206 = scalar_lea.sflag [#allocation3], %s205
        %s207 = sand.u32 %s30, 1
        %s208 = smul.addr %s207, 8
        %s209 = scalar_lea.vmem [#allocation2], %s208
        // Predicated region
        $region37: #{decoder_block_forward.1} parent=35 // pred_check
          %p210 = pneg %p43
        $region38: #{decoder_block_forward.1} parent=35 // pred_check_branch
          %212 = sbr.rel (%p210) target = $region40
        $region39: #{decoder_block_forward.1} parent=35 // pred_region
          %213 = dma.done %s206, 128
        $region40: #{decoder_block_forward.1} parent=35 // pred_fallthru
          _
        // Predicated region
        $region41: #{decoder_block_forward.1} parent=35 // pred_check
          %p214 = pneg %p64
        $region42: #{decoder_block_forward.1} parent=35 // pred_check_branch
          %216 = sbr.rel (%p214) target = $region44
        $region43: #{decoder_block_forward.1} parent=35 // pred_region
          %217 = dma.done [#allocation6], 256
        $region44: #{decoder_block_forward.1} parent=35 // pred_fallthru
          _
        // Predicated region
        $region45: #{decoder_block_forward.1} parent=35 // pred_check
          %p218 = pneg %p106
        $region46: #{decoder_block_forward.1} parent=35 // pred_check_branch
          %220 = sbr.rel (%p218) target = $region48
        $region47: #{decoder_block_forward.1} parent=35 // pred_region
          %221 = dma.done [#allocation6], 1024
        $region48: #{decoder_block_forward.1} parent=35 // pred_fallthru
          _
        %s222 = sand.u32 %s30, 1
        %s223 = scalar_lea.sflag [#allocation3], %s222
        %s224 = sand.u32 %s30, 1
        %s225 = smul.addr %s224, 8
        %s226 = scalar_lea.vmem [#allocation2], %s225
        %p227 = pneg %p43
        %p228 = pneg %p40
        %p229 = pneg %p64
        %p230 = pneg %p61
        %p231 = pneg %p85
        %p232 = pneg %p82
        %p233 = pneg %p106
        %p234 = pneg %p103
        %p235 = pneg %p132
        %p236 = pneg %p129
        %s237 = sand.u32 %s119, 1
        %s238 = scalar_lea.sflag [#allocation4], %s237
        %s239 = sand.u32 %s119, 1
        %s240 = smul.addr %s239, 8
        %s241 = scalar_lea.vmem [#allocation8], %s240
        %v243 = vld [vmem:[%s209] sm:$0xff]
        %v244 = vpack.c.bf16 %v243, %v243
        %v245 = vld [vmem:[#allocation5] sm:$0xf]
        %v246 = vld [vmem:[#allocation5 + $0x4] sm:$0xf]
        %v247 = vld [vmem:[#allocation5 + $0x8] sm:$0xf]
        %v248 = vld [vmem:[#allocation5 + $0xc] sm:$0xf]
        %v249 = vld [vmem:[%s2] sm:$0x1]
        %v250 = vlaneseq
        %v251 = vshrl.u32 %v250, 7
        %v252 = vsub.s32 0, %v251
        %v253 = vrot.slane %v249, %v252
        %v258 = vunpack.c.l.b16 %v245
        %v259 = vunpack.c.l.b16 %v246
        %v260 = vunpack.c.l.b16 %v247
        %v261 = vunpack.c.l.b16 %v248
        %v262 = vpack.c.b16 %v259, %v258
        %v263 = vpack.c.b16 %v261, %v260
        %vm266 = vcmask 261120
        %v268 = vsel %vm266, %v244, 0
        %270 = vmatprep.subr.bf16.mxu0 0
        %271 = vmatpush1.bf16.msra.mxu0 0
        %272 = vmatprep.subr.bf16.mxu0 0
        %273 = vmatpush1.bf16.msra.mxu0 0
        %274 = vmatprep.subr.bf16.mxu0 0
        %275 = vmatpush1.bf16.msra.mxu0 0
        %276 = vmatprep.subr.bf16.mxu0 0
        %277 = vmatpush1.bf16.msra.mxu0 0
        %278 = vmatprep.subr.bf16.mxu0 0
        %279 = vmatpush1.bf16.msra.mxu0 0
        %280 = vmatprep.subr.bf16.mxu0 0
        %281 = vmatpush1.bf16.msra.mxu0 0
        %282 = vmatprep.subr.bf16.mxu0 0
        %283 = vmatpush1.bf16.msra.mxu0 %v263
        %284 = vmatprep.subr.bf16.mxu0 0
        %285 = vmatpush1.bf16.msra.mxu0 %v262
        %286 = vmatprep.subr.bf16.mxu0 0
        %287 = vmatpush2.bf16.msra.mxu0 0
        %288 = vmatprep.subr.bf16.mxu0 0
        %289 = vmatpush2.bf16.msra.mxu0 0
        %290 = vmatprep.subr.bf16.mxu0 0
        %291 = vmatpush2.bf16.msra.mxu0 0
        %292 = vmatprep.subr.bf16.mxu0 0
        %293 = vmatpush2.bf16.msra.mxu0 0
        %294 = vmatprep.subr.bf16.mxu0 0
        %295 = vmatpush2.bf16.msra.mxu0 0
        %296 = vmatprep.subr.bf16.mxu0 0
        %297 = vmatpush2.bf16.msra.mxu0 0
        %298 = vmatprep.subr.bf16.mxu0 0
        %299 = vmatpush2.bf16.msra.mxu0 0
        %300 = vmatprep.subr.bf16.mxu0 0
        %301 = vmatpush2.bf16.msra.mxu0 0
        %302 = vmatprep.mubr.bf16.mxu0 0
        %303 = vmatmul.mubr.bf16.gmra.mxu0 %v268
        %v304 = vpop.f32.mrf.mxu0
        %v305 = vadd.f32 %v253, %v304
        %v306 = vpop.f32.mrf.mxu0
        %v307 = vpop.f32.mrf.mxu0
        %v308 = vpop.f32.mrf.mxu0
        %309 = vdwg.mxu0
        %v310 = vmax.f32 %v305, 0.0
        %311 = vadd.xlane.f32.xlu0 %v310
        %v312 = vpop.xlane.xlu0 %311
        %v313 = vmul.f32 %v312, 0.03125
        %v314 = vmul.f32 %v310, %v310
        %315 = vadd.xlane.f32.xlu0 %v314
        %v316 = vpop.xlane.xlu0 %315
        %v317 = vmul.f32 %v316, 0.03125
        %v318 = vmul.f32 %v313, %v313
        %v319 = vsub.f32 %v317, %v318
        %v320 = vld [vmem:[%s2 + $0x1] sm:$0x1]
        %v321 = vadd.f32 %v319, 1e-05
        %v322 = vrsqrt.pop %v321
        %v323 = vlaneseq
        %v324 = vshrl.u32 %v323, 7
        %v325 = vsub.s32 0, %v324
        %v326 = vrot.slane %v320, %v325
        %v327 = vmul.f32 %v326, %v322
        %v328 = vsub.f32 %v310, %v313
        %v329 = vmul.f32 %v328, %v327
        %v330 = vld [vmem:[%s2 + $0x2] sm:$0x1]
        %v331 = vlaneseq
        %v332 = vshrl.u32 %v331, 7
        %v333 = vsub.s32 0, %v332
        %v334 = vrot.slane %v330, %v333
        %v335 = vadd.f32 %v329, %v334
        %v336 = vpack.c.bf16 %v335, %v335
        %v337 = vld [vmem:[#allocation7] sm:$0xf]
        %v338 = vld [vmem:[#allocation7 + $0x4] sm:$0xf]
        %v339 = vld [vmem:[#allocation7 + $0x8] sm:$0xf]
        %v340 = vld [vmem:[#allocation7 + $0xc] sm:$0xf]
        %v341 = vld [vmem:[#allocation7 + $0x10] sm:$0xf]
        %v342 = vld [vmem:[#allocation7 + $0x14] sm:$0xf]
        %v343 = vld [vmem:[#allocation7 + $0x18] sm:$0xf]
        %v344 = vld [vmem:[#allocation7 + $0x1c] sm:$0xf]
        %v345 = vld [vmem:[#allocation7 + $0x20] sm:$0xf]
        %v346 = vld [vmem:[#allocation7 + $0x24] sm:$0xf]
        %v347 = vld [vmem:[#allocation7 + $0x28] sm:$0xf]
        %v348 = vld [vmem:[#allocation7 + $0x2c] sm:$0xf]
        %v349 = vld [vmem:[#allocation7 + $0x30] sm:$0xf]
        %v350 = vld [vmem:[#allocation7 + $0x34] sm:$0xf]
        %v351 = vld [vmem:[#allocation7 + $0x38] sm:$0xf]
        %v352 = vld [vmem:[#allocation7 + $0x3c] sm:$0xf]
        %v353 = vld [vmem:[%s2 + $0x3] sm:$0x1]
        %v354 = vlaneseq
        %v355 = vshrl.u32 %v354, 7
        %v356 = vsub.s32 0, %v355
        %v357 = vrot.slane %v353, %v356
        %v374 = vunpack.c.l.b16 %v337
        %v375 = vunpack.c.l.b16 %v338
        %v376 = vunpack.c.l.b16 %v339
        %v377 = vunpack.c.l.b16 %v340
        %v378 = vunpack.c.l.b16 %v341
        %v379 = vunpack.c.l.b16 %v342
        %v380 = vunpack.c.l.b16 %v343
        %v381 = vunpack.c.l.b16 %v344
        %v382 = vunpack.c.l.b16 %v345
        %v383 = vunpack.c.l.b16 %v346
        %v384 = vunpack.c.l.b16 %v347
        %v385 = vunpack.c.l.b16 %v348
        %v386 = vunpack.c.l.b16 %v349
        %v387 = vunpack.c.l.b16 %v350
        %v388 = vunpack.c.l.b16 %v351
        %v389 = vunpack.c.l.b16 %v352
        %v390 = vpack.c.b16 %v375, %v374
        %v391 = vpack.c.b16 %v377, %v376
        %v392 = vpack.c.b16 %v379, %v378
        %v393 = vpack.c.b16 %v381, %v380
        %v394 = vpack.c.b16 %v383, %v382
        %v395 = vpack.c.b16 %v385, %v384
        %v396 = vpack.c.b16 %v387, %v386
        %v397 = vpack.c.b16 %v389, %v388
        %406 = vmatprep.subr.bf16.mxu0 0
        %407 = vmatpush1.bf16.msra.mxu0 %v397
        %408 = vmatprep.subr.bf16.mxu0 0
        %409 = vmatpush1.bf16.msra.mxu0 %v396
        %410 = vmatprep.subr.bf16.mxu0 0
        %411 = vmatpush1.bf16.msra.mxu0 %v395
        %412 = vmatprep.subr.bf16.mxu0 0
        %413 = vmatpush1.bf16.msra.mxu0 %v394
        %414 = vmatprep.subr.bf16.mxu0 0
        %415 = vmatpush1.bf16.msra.mxu0 %v393
        %416 = vmatprep.subr.bf16.mxu0 0
        %417 = vmatpush1.bf16.msra.mxu0 %v392
        %418 = vmatprep.subr.bf16.mxu0 0
        %419 = vmatpush1.bf16.msra.mxu0 %v391
        %420 = vmatprep.subr.bf16.mxu0 0
        %421 = vmatpush1.bf16.msra.mxu0 %v390
        %422 = vmatprep.subr.bf16.mxu0 0
        %423 = vmatpush2.bf16.msra.mxu0 0
        %424 = vmatprep.subr.bf16.mxu0 0
        %425 = vmatpush2.bf16.msra.mxu0 0
        %426 = vmatprep.subr.bf16.mxu0 0
        %427 = vmatpush2.bf16.msra.mxu0 0
        %428 = vmatprep.subr.bf16.mxu0 0
        %429 = vmatpush2.bf16.msra.mxu0 0
        %430 = vmatprep.subr.bf16.mxu0 0
        %431 = vmatpush2.bf16.msra.mxu0 0
        %432 = vmatprep.subr.bf16.mxu0 0
        %433 = vmatpush2.bf16.msra.mxu0 0
        %434 = vmatprep.subr.bf16.mxu0 0
        %435 = vmatpush2.bf16.msra.mxu0 0
        %436 = vmatprep.subr.bf16.mxu0 0
        %437 = vmatpush2.bf16.msra.mxu0 0
        %438 = vmatprep.mubr.bf16.mxu0 0
        %439 = vmatmul.mubr.bf16.gmra.mxu0 %v336
        %v440 = vpop.f32.mrf.mxu0
        %v441 = vadd.f32 %v357, %v440
        %v442 = vpop.f32.mrf.mxu0
        %v443 = vpop.f32.mrf.mxu0
        %v444 = vpop.f32.mrf.mxu0
        %445 = vdwg.mxu0
        %446 = vst.msk [vmem:[%s241] sm:$0xff] %vm266, %v441
        %s447 = sand.u32 %s119, 1
        %s448 = scalar_lea.sflag [#allocation4], %s447
        %s449 = sand.u32 %s119, 1
        %s450 = smul.addr %s449, 8
        %s451 = scalar_lea.vmem [#allocation8], %s450
        // Predicated region
        $region49: #{decoder_block_forward.1} parent=35 // pred_check
          %p452 = pneg %p129
        $region50: #{decoder_block_forward.1} parent=35 // pred_check_branch
          %454 = sbr.rel (%p452) target = $region52
        $region51: #{decoder_block_forward.1} parent=35 // pred_region
          %s456 = ssub.s32 128, 128
          %457 = vsyncadd %s448, %s456
          %s458 = smul.addr %s22, 128
          %s459 = scalar_lea.hbm %s4, %s458
          %s461 = sshll.u32 %s451, 4
          %s462 = int_to_ptr.vmem [resolvable:$true] %s461
          %464 = dma.vmem_to_hbm [thread:$0]  %s462, 128, %s459, %s448
        $region52: #{decoder_block_forward.1} parent=35 // pred_fallthru
          _
      $region36: #{decoder_block_forward.1} parent=5 // pred_fallthru
        _
      %p465 = scmp.le.s32.totalorder 2, %s17
      // Predicated region
      $region53: #{decoder_block_forward.1} parent=5 // pred_check
        %p466 = pneg %p465
      $region54: #{decoder_block_forward.1} parent=5 // pred_check_branch
        %468 = sbr.rel (%p466) target = $region56
      $region55: #{decoder_block_forward.1} parent=5 // pred_region
        %s469 = ssub.s32 %s17, 2
        // Predicated region
        $region57: #{decoder_block_forward.1} parent=55 // pred_check
          %p470 = pneg %p135
        $region58: #{decoder_block_forward.1} parent=55 // pred_check_branch
          %472 = sbr.rel (%p470) target = $region60
        $region59: #{decoder_block_forward.1} parent=55 // pred_region
          %s473 = sand.u32 %s120, 1
          %s474 = scalar_lea.sflag [#allocation4], %s473
          %s475 = sand.u32 %s120, 1
          %s476 = smul.addr %s475, 8
          %s477 = scalar_lea.vmem [#allocation8], %s476
          %478 = dma.done %s474, 128
        $region60: #{decoder_block_forward.1} parent=55 // pred_fallthru
          _
      $region56: #{decoder_block_forward.1} parent=5 // pred_fallthru
        _
    $region6: #{decoder_block_forward.1} parent=1 // loop_footer
      %s21 = sadd.s32 1, %s17
    $region7: #{decoder_block_forward.1} parent=1 // loop_footer_branch
      %16 = sbr.rel target = $region3
    $region8: #{decoder_block_forward.1} parent=1 // loop_exit
      _
    %479 = vsyncpa [#allocation3], 1
    %s480 = scalar_lea.sflag [#allocation3], 1
    %481 = vsyncpa %s480, 1
    %482 = vsyncpa [#allocation6], 1
    %483 = vsyncpa [#allocation4], 1
    %s484 = scalar_lea.sflag [#allocation4], 1
    %485 = vsyncpa %s484, 1

</llo_original>
